<compile_context>
chip_gen: v7x
topology: tpu7x:2x2x1
jax: 0.10.0
libtpu: 0.0.40
codegen_flags: <defaults>
</compile_context>

<pallas_src>
import jax
import jax.numpy as jnp
from jax.experimental import pallas as pl
from jax.experimental.pallas import tpu as pltpu


# Fused-parameter layout constants.
_W_ROWS = 8 + 128 + 128   # 264
_LANES = 128
_OUT_LANES = 8            # lanes 0-3 = actor softmax, lane 4 = critic, lanes 5-7 = 0
_TB = 1024                # batch tile for the gridded (large-batch) path


def _actor_critic_kernel(x_ref, w_ref, b_ref, out_ref):
    """x_ref: (TB, 8); w_ref: (264, 128) stacked fused weights; b_ref: (3, 128) stacked biases.
    out_ref: (TB, 8): lanes 0-3 = actor softmax, lane 4 = critic value, lanes 5-7 = 0."""
    x = x_ref[...]                       # (TB, 8)

    w1 = w_ref[0:8, :]                   # (8, 128)
    w2 = w_ref[8:136, :]                 # (128, 128)
    w3 = w_ref[136:264, :]               # (128, 128)
    b1 = b_ref[0:1, :]                   # (1, 128)
    b2 = b_ref[1:2, :]
    b3 = b_ref[2:3, :]

    h = jnp.maximum(jnp.dot(x, w1, preferred_element_type=jnp.float32) + b1, 0.0)
    h = jnp.maximum(jnp.dot(h, w2, preferred_element_type=jnp.float32) + b2, 0.0)
    y = jnp.dot(h, w3, preferred_element_type=jnp.float32) + b3    # (TB, 128)

    # Narrow epilogue: only lanes 0-7 carry useful data (0-3 actor logits, 4 critic value).
    y8 = y[:, 0:_OUT_LANES]                                         # (TB, 8)
    lane = jax.lax.broadcasted_iota(jnp.int32, (1, _OUT_LANES), 1)  # tiny (1, 8) constant
    is_actor = lane < 4

    masked = jnp.where(is_actor, y8, jnp.float32(-1e30))
    m = jnp.max(masked, axis=-1, keepdims=True)
    e = jnp.where(is_actor, jnp.exp(masked - m), 0.0)
    denom = jnp.sum(e, axis=-1, keepdims=True)
    probs = e / denom                     # exact division -> rows sum to 1 (f32 rounding)
    out_ref[...] = jnp.where(is_actor, probs, y8)


@jax.jit
def actor_critic_forward(x, w_all, b_all):
    """x: (B, 8) float32; w_all: (264, 128); b_all: (3, 128).
    Returns (actor (B, 4) softmax probs, critic (B, 1))."""
    B = x.shape[0]

    if B <= _TB:
        # Small batch: gridless call, everything fully resident in VMEM, no pipeline overhead.
        out = pl.pallas_call(
            _actor_critic_kernel,
            out_shape=jax.ShapeDtypeStruct((B, _OUT_LANES), jnp.float32),
            in_specs=[
                pl.BlockSpec(memory_space=pltpu.MemorySpace.VMEM),
                pl.BlockSpec(memory_space=pltpu.MemorySpace.VMEM),
                pl.BlockSpec(memory_space=pltpu.MemorySpace.VMEM),
            ],
            out_specs=pl.BlockSpec(memory_space=pltpu.MemorySpace.VMEM),
        )(x, w_all, b_all)
    else:
        # Large batch: tile the batch; weights stay resident across the grid (constant
        # index_map).  No pre-padding: Pallas handles the ragged final block (OOB rows are
        # computed on padded/stale data and their writes are dropped).
        out = pl.pallas_call(
            _actor_critic_kernel,
            out_shape=jax.ShapeDtypeStruct((B, _OUT_LANES), jnp.float32),
            grid=(pl.cdiv(B, _TB),),
            in_specs=[
                pl.BlockSpec((_TB, 8), lambda i: (i, 0)),
                pl.BlockSpec((_W_ROWS, _LANES), lambda i: (0, 0)),
                pl.BlockSpec((3, _LANES), lambda i: (0, 0)),
            ],
            out_specs=pl.BlockSpec((_TB, _OUT_LANES), lambda i: (i, 0)),
            compiler_params=pltpu.CompilerParams(
                dimension_semantics=("parallel",)  # v7x: split batch across the 2 TensorCores
            ),
        )(x, w_all, b_all)

    actor = out[:, 0:4]
    critic = out[:, 4:5]
    return actor, critic


def init_params(key):
    """Deterministic init mimicking PyTorch's default Linear init:
    U(-1/sqrt(fan_in), 1/sqrt(fan_in)) for weight and bias.
    Weights stored transposed vs. PyTorch, i.e. (in_features, out_features)."""
    dims = {
        "a1": (8, 64),
        "a2": (64, 32),
        "a3": (32, 4),
        "c1": (8, 32),
        "c2": (32, 32),
        "c3": (32, 1),
    }
    params = {}
    keys = jax.random.split(key, 2 * len(dims))
    for idx, (name, (fin, fout)) in enumerate(dims.items()):
        bound = 1.0 / jnp.sqrt(jnp.float32(fin))
        wkey, bkey = keys[2 * idx], keys[2 * idx + 1]
        head, layer = name[0], name[1]
        params[f"{head}w{layer}"] = jax.random.uniform(
            wkey, (fin, fout), jnp.float32, minval=-bound, maxval=bound
        )
        params[f"{head}b{layer}"] = jax.random.uniform(
            bkey, (1, fout), jnp.float32, minval=-bound, maxval=bound
        )
    return params


def pack_params(params):
    """Pack both heads into block-diagonal, 128-lane-padded fused weights (done once)."""
    w1 = jnp.zeros((8, _LANES), jnp.float32)
    w1 = w1.at[:, 0:64].set(params["aw1"]).at[:, 64:96].set(params["cw1"])
    b1 = jnp.zeros((1, _LANES), jnp.float32)
    b1 = b1.at[:, 0:64].set(params["ab1"]).at[:, 64:96].set(params["cb1"])

    w2 = jnp.zeros((128, _LANES), jnp.float32)
    w2 = w2.at[0:64, 0:32].set(params["aw2"]).at[64:96, 32:64].set(params["cw2"])
    b2 = jnp.zeros((1, _LANES), jnp.float32)
    b2 = b2.at[:, 0:32].set(params["ab2"]).at[:, 32:64].set(params["cb2"])

    w3 = jnp.zeros((128, _LANES), jnp.float32)
    w3 = w3.at[0:32, 0:4].set(params["aw3"]).at[32:64, 4:5].set(params["cw3"])
    b3 = jnp.zeros((1, _LANES), jnp.float32)
    b3 = b3.at[:, 0:4].set(params["ab3"]).at[:, 4:5].set(params["cb3"])

    w_all = jnp.concatenate([w1, w2, w3], axis=0)   # (264, 128)
    b_all = jnp.concatenate([b1, b2, b3], axis=0)   # (3, 128)
    return w_all, b_all


def reference_forward(x, params):
    """Plain-JAX reference (matches the PyTorch module semantics)."""
    h = jnp.maximum(x @ params["aw1"] + params["ab1"], 0.0)
    h = jnp.maximum(h @ params["aw2"] + params["ab2"], 0.0)
    logits = h @ params["aw3"] + params["ab3"]
    actor = jax.nn.softmax(logits, axis=-1)

    g = jnp.maximum(x @ params["cw1"] + params["cb1"], 0.0)
    g = jnp.maximum(g @ params["cw2"] + params["cb2"], 0.0)
    critic = g @ params["cw3"] + params["cb3"]
    return actor, critic


if __name__ == "__main__":
    key = jax.random.PRNGKey(0)
    pkey, xkey, xkey2 = jax.random.split(key, 3)

    params = init_params(pkey)
    w_all, b_all = pack_params(params)

    # --- small batch: gridless path ---
    B = 8
    x = jax.random.normal(xkey, (B, 8), dtype=jnp.float32)
    actor, critic = jax.block_until_ready(actor_critic_forward(x, w_all, b_all))

    ref_actor, ref_critic = reference_forward(x, params)
    assert actor.shape == (B, 4) and critic.shape == (B, 1)
    assert jnp.allclose(actor, ref_actor, atol=1e-4, rtol=1e-4)
    assert jnp.allclose(critic, ref_critic, atol=1e-4, rtol=1e-4)
    assert jnp.allclose(jnp.sum(actor, axis=-1), jnp.ones((B,)), atol=1e-5)

    # --- larger batch: exercises the batch-tiled grid path with a ragged final block ---
    B2 = 2500   # 3 grid steps of 1024 (last block partial)
    x2 = jax.random.normal(xkey2, (B2, 8), dtype=jnp.float32)
    actor2, critic2 = jax.block_until_ready(actor_critic_forward(x2, w_all, b_all))
    ref_a2, ref_c2 = reference_forward(x2, params)
    assert actor2.shape == (B2, 4) and critic2.shape == (B2, 1)
    assert jnp.allclose(actor2, ref_a2, atol=1e-4, rtol=1e-4)
    assert jnp.allclose(critic2, ref_c2, atol=1e-4, rtol=1e-4)
    assert jnp.allclose(jnp.sum(actor2, axis=-1), jnp.ones((B2,)), atol=1e-5)

    print("KERNEL_OK")
</pallas_src>

<mosaic_0001>
module attributes {stable_mosaic.version = 11 : i64} {
  func.func @_actor_critic_kernel(%arg0: memref<8x8xf32, #tpu.memory_space<vmem>>, %arg1: memref<264x128xf32, #tpu.memory_space<vmem>>, %arg2: memref<3x128xf32, #tpu.memory_space<vmem>>, %arg3: memref<8x8xf32, #tpu.memory_space<vmem>>) attributes {dimension_semantics = [], scalar_prefetch = 0 : i64, scratch_operands = 0 : i64, tpu.core_type = #tpu.core_type<tc>} {
    %c0 = arith.constant 0 : index
    %c0_0 = arith.constant 0 : index
    %0 = vector.load %arg0[%c0, %c0_0] : memref<8x8xf32, #tpu.memory_space<vmem>>, vector<8x8xf32>
    %c0_1 = arith.constant 0 : index
    %c0_2 = arith.constant 0 : index
    %1 = vector.load %arg1[%c0_1, %c0_2] : memref<264x128xf32, #tpu.memory_space<vmem>>, vector<8x128xf32>
    %c8 = arith.constant 8 : index
    %c0_3 = arith.constant 0 : index
    %2 = vector.load %arg1[%c8, %c0_3] : memref<264x128xf32, #tpu.memory_space<vmem>>, vector<128x128xf32>
    %c136 = arith.constant 136 : index
    %c0_4 = arith.constant 0 : index
    %3 = vector.load %arg1[%c136, %c0_4] : memref<264x128xf32, #tpu.memory_space<vmem>>, vector<128x128xf32>
    %c0_5 = arith.constant 0 : index
    %c0_6 = arith.constant 0 : index
    %4 = vector.load %arg2[%c0_5, %c0_6] : memref<3x128xf32, #tpu.memory_space<vmem>>, vector<1x128xf32>
    %c1 = arith.constant 1 : index
    %c0_7 = arith.constant 0 : index
    %5 = vector.load %arg2[%c1, %c0_7] : memref<3x128xf32, #tpu.memory_space<vmem>>, vector<1x128xf32>
    %c2 = arith.constant 2 : index
    %c0_8 = arith.constant 0 : index
    %6 = vector.load %arg2[%c2, %c0_8] : memref<3x128xf32, #tpu.memory_space<vmem>>, vector<1x128xf32>
    %cst = arith.constant dense<0.000000e+00> : vector<8x128xf32>
    %7 = tpu.matmul %0, %1, %cst {dimension_numbers = #tpu.dot_dimension_numbers<[1], [0], [0], [1], [0, 0, 1, 1], [], []>} : vector<8x8xf32>, vector<8x128xf32>, vector<8x128xf32> -> vector<8x128xf32>
    %8 = vector.broadcast %4 : vector<1x128xf32> to vector<8x128xf32>
    %9 = arith.addf %7, %8 : vector<8x128xf32>
    %cst_9 = arith.constant 0.000000e+00 : f32
    %10 = vector.broadcast %cst_9 : f32 to vector<8x128xf32>
    %11 = arith.maximumf %9, %10 : vector<8x128xf32>
    %cst_10 = arith.constant dense<0.000000e+00> : vector<8x128xf32>
    %12 = tpu.matmul %11, %2, %cst_10 {dimension_numbers = #tpu.dot_dimension_numbers<[1], [0], [0], [1], [0, 0, 1, 1], [], []>} : vector<8x128xf32>, vector<128x128xf32>, vector<8x128xf32> -> vector<8x128xf32>
    %13 = vector.broadcast %5 : vector<1x128xf32> to vector<8x128xf32>
    %14 = arith.addf %12, %13 : vector<8x128xf32>
    %cst_11 = arith.constant 0.000000e+00 : f32
    %15 = vector.broadcast %cst_11 : f32 to vector<8x128xf32>
    %16 = arith.maximumf %14, %15 : vector<8x128xf32>
    %cst_12 = arith.constant dense<0.000000e+00> : vector<8x128xf32>
    %17 = tpu.matmul %16, %3, %cst_12 {dimension_numbers = #tpu.dot_dimension_numbers<[1], [0], [0], [1], [0, 0, 1, 1], [], []>} : vector<8x128xf32>, vector<128x128xf32>, vector<8x128xf32> -> vector<8x128xf32>
    %18 = vector.broadcast %6 : vector<1x128xf32> to vector<8x128xf32>
    %19 = arith.addf %17, %18 : vector<8x128xf32>
    %20 = vector.extract_strided_slice %19 {offsets = [0, 0], sizes = [8, 8], strides = [1, 1]} : vector<8x128xf32> to vector<8x8xf32>
    %21 = tpu.iota {dimensions = array<i32: 1>} : vector<1x8xi32>
    %c4_i32 = arith.constant 4 : i32
    %22 = vector.broadcast %c4_i32 : i32 to vector<1x8xi32>
    %23 = arith.cmpi slt, %21, %22 : vector<1x8xi32>
    %cst_13 = arith.constant -1.000000e+30 : f32
    %24 = vector.shape_cast %23 : vector<1x8xi1> to vector<1x8xi1>
    %25 = vector.broadcast %24 : vector<1x8xi1> to vector<8x8xi1>
    %26 = vector.broadcast %cst_13 : f32 to vector<8x8xf32>
    %27 = arith.select %25, %20, %26 : vector<8x8xi1>, vector<8x8xf32>
    %cst_14 = arith.constant dense<0xFF800000> : vector<8xf32>
    %28 = vector.multi_reduction <maximumf>, %27, %cst_14 [1] : vector<8x8xf32> to vector<8xf32>
    %29 = vector.shape_cast %28 : vector<8xf32> to vector<8x1xf32>
    %30 = vector.broadcast %29 : vector<8x1xf32> to vector<8x8xf32>
    %31 = arith.subf %27, %30 : vector<8x8xf32>
    %32 = math.exp %31 : vector<8x8xf32>
    %cst_15 = arith.constant 0.000000e+00 : f32
    %33 = vector.shape_cast %23 : vector<1x8xi1> to vector<1x8xi1>
    %34 = vector.broadcast %33 : vector<1x8xi1> to vector<8x8xi1>
    %35 = vector.broadcast %cst_15 : f32 to vector<8x8xf32>
    %36 = arith.select %34, %32, %35 : vector<8x8xi1>, vector<8x8xf32>
    %cst_16 = arith.constant dense<0.000000e+00> : vector<8xf32>
    %37 = vector.multi_reduction <add>, %36, %cst_16 [1] : vector<8x8xf32> to vector<8xf32>
    %38 = vector.shape_cast %37 : vector<8xf32> to vector<8x1xf32>
    %39 = vector.broadcast %38 : vector<8x1xf32> to vector<8x8xf32>
    %40 = arith.divf %36, %39 : vector<8x8xf32>
    %41 = vector.shape_cast %23 : vector<1x8xi1> to vector<1x8xi1>
    %42 = vector.broadcast %41 : vector<1x8xi1> to vector<8x8xi1>
    %43 = arith.select %42, %40, %20 : vector<8x8xi1>, vector<8x8xf32>
    %c0_17 = arith.constant 0 : index
    %c0_18 = arith.constant 0 : index
    %44 = vector.load %arg3[%c0_17, %c0_18] : memref<8x8xf32, #tpu.memory_space<vmem>>, vector<8x8xf32>
    tpu.vector_store %arg3[%c0_17, %c0_18], %43 {strides = array<i32>} : memref<8x8xf32, #tpu.memory_space<vmem>>, vector<8x8xf32>,
    return
  }
}

</mosaic_0001>

<llo_original>
// kernel: actor_critic_forward.1
$region0: #{actor_critic_forward.1}
  #allocation0 [shape = 'u32[]', space=smem, size = 0x4, offset = 0x4, fixed_abs, tag = 'smem constant byte address 0x4 - core index']
  #allocation1 [shape = 'u32[144,128]{1,0:T(1,128)}', space=vmem, size = 0x12000, scoped, tag = 'internal scratch']
  %s0 = inlined_call_operand.hbm [shape: f32[8,8], index: 0, kind: input, shape index: {}]
  %s1 = inlined_call_operand.hbm [shape: f32[264,128], index: 1, kind: input, shape index: {}]
  %s2 = inlined_call_operand.vmem [shape: f32[3,128], index: 2, kind: input, shape index: {}]
  %s3 = inlined_call_operand.vmem [shape: f32[8,8], index: 3, kind: output, shape index: {}]
  %s4 = sld [smem:[#allocation0]]
  $region30: #{actor_critic_forward.1} parent=0
    _
  %s6 = ssub.s32 1, %s4
  %s7 = scalar_select 0, %s6, %s4
  $region1: #{actor_critic_forward.1} parent=0
    #allocation2 [shape = 'u8[4096]{0}', space=vmem, size = 0x1000, scoped, tag = 'input window, operand 0, single buffered']
    #allocation3 [shape = 's32[1]{0}', space=sflag, size = 0x4, scoped, tag = 'scoped memory for actor_critic_forward.1']
    #allocation4 [shape = 'u8[135168]{0}', space=vmem, size = 0x21000, scoped, tag = 'input window, operand 1, single buffered']
    #allocation5 [shape = 's32[1]{0}', space=sflag, size = 0x4, scoped, tag = 'scoped memory for actor_critic_forward.1']
    %8 = vsyncpa [#allocation3], 0
    %9 = vsyncpa [#allocation5], 0
    // Predicated region
    $region2: #{actor_critic_forward.1} parent=1 // pred_check
      _
    $region3: #{actor_critic_forward.1} parent=1 // pred_check_branch
      %11 = sbr.rel (0) target = $region5
    $region4: #{actor_critic_forward.1} parent=1 // pred_region
      %s13 = ssub.s32 128, 128
      %14 = vsyncadd [#allocation3], %s13
      %s16 = sshll.u32 [#allocation2], 4
      %s17 = int_to_ptr.vmem [resolvable:$true] %s16
      %19 = dma.hbm_to_vmem [thread:$0]  %s0, 128, %s17, [#allocation3]
    $region5: #{actor_critic_forward.1} parent=1 // pred_fallthru
      _
    // Predicated region
    $region6: #{actor_critic_forward.1} parent=1 // pred_check
      _
    $region7: #{actor_critic_forward.1} parent=1 // pred_check_branch
      %21 = sbr.rel (0) target = $region9
    $region8: #{actor_critic_forward.1} parent=1 // pred_region
      %s23 = ssub.s32 4224, 4224
      %24 = vsyncadd [#allocation5], %s23
      %s25 = sshll.u32 [#allocation4], 4
      %s26 = int_to_ptr.vmem [resolvable:$true] %s25
      %31 = dma.hbm_to_vmem [thread:$0]  %s1, 4224, %s26, [#allocation5], 128, 128, 8
    $region9: #{actor_critic_forward.1} parent=1 // pred_fallthru
      _
    // Predicated region
    $region10: #{actor_critic_forward.1} parent=1 // pred_check
      _
    $region11: #{actor_critic_forward.1} parent=1 // pred_check_branch
      %33 = sbr.rel (0) target = $region13
    $region12: #{actor_critic_forward.1} parent=1 // pred_region
      _
    $region13: #{actor_critic_forward.1} parent=1 // pred_fallthru
      _
    // Predicated region
    $region14: #{actor_critic_forward.1} parent=1 // pred_check
      _
    $region15: #{actor_critic_forward.1} parent=1 // pred_check_branch
      %35 = sbr.rel (0) target = $region17
    $region16: #{actor_critic_forward.1} parent=1 // pred_region
      %36 = dma.done [#allocation3], 128
    $region17: #{actor_critic_forward.1} parent=1 // pred_fallthru
      _
    // Predicated region
    $region18: #{actor_critic_forward.1} parent=1 // pred_check
      _
    $region19: #{actor_critic_forward.1} parent=1 // pred_check_branch
      %38 = sbr.rel (0) target = $region21
    $region20: #{actor_critic_forward.1} parent=1 // pred_region
      %39 = dma.done [#allocation5], 4224
    $region21: #{actor_critic_forward.1} parent=1 // pred_fallthru
      _
    %v40 = vld [vmem:[#allocation2] sm:$0xff]
    %v41 = vld [vmem:[#allocation4] sm:$0xff]
    %v42 = vld [vmem:[#allocation4 + $0x8] sm:$0xff]
    %v43 = vld [vmem:[#allocation4 + $0x10] sm:$0xff]
    %v44 = vld [vmem:[#allocation4 + $0x18] sm:$0xff]
    %v45 = vld [vmem:[#allocation4 + $0x20] sm:$0xff]
    %v46 = vld [vmem:[#allocation4 + $0x28] sm:$0xff]
    %v47 = vld [vmem:[#allocation4 + $0x30] sm:$0xff]
    %v48 = vld [vmem:[#allocation4 + $0x38] sm:$0xff]
    %v49 = vld [vmem:[#allocation4 + $0x40] sm:$0xff]
    %v50 = vld [vmem:[#allocation4 + $0x48] sm:$0xff]
    %v51 = vld [vmem:[#allocation4 + $0x50] sm:$0xff]
    %v52 = vld [vmem:[#allocation4 + $0x58] sm:$0xff]
    %v53 = vld [vmem:[#allocation4 + $0x60] sm:$0xff]
    %v54 = vld [vmem:[#allocation4 + $0x68] sm:$0xff]
    %v55 = vld [vmem:[#allocation4 + $0x70] sm:$0xff]
    %v56 = vld [vmem:[#allocation4 + $0x78] sm:$0xff]
    %v57 = vld [vmem:[#allocation4 + $0x80] sm:$0xff]
    %v58 = vld [vmem:[#allocation4 + $0x88] sm:$0xff]
    %v59 = vld [vmem:[#allocation4 + $0x90] sm:$0xff]
    %v60 = vld [vmem:[#allocation4 + $0x98] sm:$0xff]
    %v61 = vld [vmem:[#allocation4 + $0xa0] sm:$0xff]
    %v62 = vld [vmem:[#allocation4 + $0xa8] sm:$0xff]
    %v63 = vld [vmem:[#allocation4 + $0xb0] sm:$0xff]
    %v64 = vld [vmem:[#allocation4 + $0xb8] sm:$0xff]
    %v65 = vld [vmem:[#allocation4 + $0xc0] sm:$0xff]
    %v66 = vld [vmem:[#allocation4 + $0xc8] sm:$0xff]
    %v67 = vld [vmem:[#allocation4 + $0xd0] sm:$0xff]
    %v68 = vld [vmem:[#allocation4 + $0xd8] sm:$0xff]
    %v69 = vld [vmem:[#allocation4 + $0xe0] sm:$0xff]
    %v70 = vld [vmem:[#allocation4 + $0xe8] sm:$0xff]
    %v71 = vld [vmem:[#allocation4 + $0xf0] sm:$0xff]
    %v72 = vld [vmem:[#allocation4 + $0xf8] sm:$0xff]
    %v73 = vld [vmem:[#allocation4 + $0x100] sm:$0xff]
    %v74 = vld [vmem:[%s2] sm:$0x1]
    %v75 = vld [vmem:[%s2 + $0x1] sm:$0x1]
    %v76 = vld [vmem:[%s2 + $0x2] sm:$0x1]
    %v77 = vlaneseq
    %v78 = vshrl.u32 %v77, 7
    %v79 = vsub.s32 0, %v78
    %v80 = vrot.slane %v74, %v79
    %vm81 = vcmask 64512
    %v83 = vsel %vm81, %v40, 0
    %85 = vmatprep.subr.mxu0 0.0
    %86 = vmatpush1.msra.mxu0 %v41
    %87 = vmatprep.subr.mxu0 0.0
    %88 = vmatpush1.msra.mxu0 0.0
    %89 = vmatprep.subr.mxu0 0.0
    %90 = vmatpush1.msra.mxu0 0.0
    %91 = vmatprep.subr.mxu0 0.0
    %92 = vmatpush1.msra.mxu0 0.0
    %93 = vmatprep.subr.mxu0 0.0
    %94 = vmatpush1.msra.mxu0 0.0
    %95 = vmatprep.subr.mxu0 0.0
    %96 = vmatpush1.msra.mxu0 0.0
    %97 = vmatprep.subr.mxu0 0.0
    %98 = vmatpush1.msra.mxu0 0.0
    %99 = vmatprep.subr.mxu0 0.0
    %100 = vmatpush1.msra.mxu0 0.0
    %101 = vmatprep.subr.mxu0 0.0
    %102 = vmatpush1.msra.mxu0 0.0
    %103 = vmatprep.subr.mxu0 0.0
    %104 = vmatpush1.msra.mxu0 0.0
    %105 = vmatprep.subr.mxu0 0.0
    %106 = vmatpush1.msra.mxu0 0.0
    %107 = vmatprep.subr.mxu0 0.0
    %108 = vmatpush1.msra.mxu0 0.0
    %109 = vmatprep.subr.mxu0 0.0
    %110 = vmatpush1.msra.mxu0 0.0
    %111 = vmatprep.subr.mxu0 0.0
    %112 = vmatpush1.msra.mxu0 0.0
    %113 = vmatprep.subr.mxu0 0.0
    %114 = vmatpush1.msra.mxu0 0.0
    %115 = vmatprep.subr.mxu0 0.0
    %116 = vmatpush1.msra.mxu0 0.0
    %117 = vmatprep.subr.mxu0 0.0
    %118 = vmatpush1.msra.mxu0 0.0
    %119 = vmatprep.subr.mxu0 0.0
    %120 = vmatpush1.msra.mxu0 0.0
    %121 = vmatprep.subr.mxu0 0.0
    %122 = vmatpush1.msra.mxu0 0.0
    %123 = vmatprep.subr.mxu0 0.0
    %124 = vmatpush1.msra.mxu0 0.0
    %125 = vmatprep.subr.mxu0 0.0
    %126 = vmatpush1.msra.mxu0 0.0
    %127 = vmatprep.subr.mxu0 0.0
    %128 = vmatpush1.msra.mxu0 0.0
    %129 = vmatprep.subr.mxu0 0.0
    %130 = vmatpush1.msra.mxu0 0.0
    %131 = vmatprep.subr.mxu0 0.0
    %132 = vmatpush1.msra.mxu0 0.0
    %133 = vmatprep.subr.mxu0 0.0
    %134 = vmatpush1.msra.mxu0 0.0
    %135 = vmatprep.subr.mxu0 0.0
    %136 = vmatpush1.msra.mxu0 0.0
    %137 = vmatprep.subr.mxu0 0.0
    %138 = vmatpush1.msra.mxu0 0.0
    %139 = vmatprep.subr.mxu0 0.0
    %140 = vmatpush1.msra.mxu0 0.0
    %141 = vmatprep.subr.mxu0 0.0
    %142 = vmatpush1.msra.mxu0 0.0
    %143 = vmatprep.subr.mxu0 0.0
    %144 = vmatpush1.msra.mxu0 0.0
    %145 = vmatprep.subr.mxu0 0.0
    %146 = vmatpush1.msra.mxu0 0.0
    %147 = vmatprep.subr.mxu0 0.0
    %148 = vmatpush1.msra.mxu0 0.0
    %149 = vmatprep.mubr.f32.mxu0 0.0
    %150 = vmatmul.mubr.f32.gmra.mrb[0].mxu0 %v83
    %v151 = vpop.f32.mrb[0].mxu0
    %v152 = vadd.f32 %v80, %v151
    %v153 = vpop.f32.mrb[0].mxu0
    %154 = vdwg.mxu0
    %v155 = vmax.f32 %v152, 0.0
    %v156 = vlaneseq
    %v157 = vshrl.u32 %v156, 7
    %v158 = vsub.s32 0, %v157
    %v159 = vrot.slane %v75, %v158
    %160 = vmatprep.subr.mxu0 0.0
    %161 = vmatpush1.msra.mxu0 %v42
    %162 = vmatprep.subr.mxu0 0.0
    %163 = vmatpush1.msra.mxu0 %v43
    %164 = vmatprep.subr.mxu0 0.0
    %165 = vmatpush1.msra.mxu0 %v44
    %166 = vmatprep.subr.mxu0 0.0
    %167 = vmatpush1.msra.mxu0 %v45
    %168 = vmatprep.subr.mxu0 0.0
    %169 = vmatpush1.msra.mxu0 %v46
    %170 = vmatprep.subr.mxu0 0.0
    %171 = vmatpush1.msra.mxu0 %v47
    %172 = vmatprep.subr.mxu0 0.0
    %173 = vmatpush1.msra.mxu0 %v48
    %174 = vmatprep.subr.mxu0 0.0
    %175 = vmatpush1.msra.mxu0 %v49
    %176 = vmatprep.subr.mxu0 0.0
    %177 = vmatpush1.msra.mxu0 %v50
    %178 = vmatprep.subr.mxu0 0.0
    %179 = vmatpush1.msra.mxu0 %v51
    %180 = vmatprep.subr.mxu0 0.0
    %181 = vmatpush1.msra.mxu0 %v52
    %182 = vmatprep.subr.mxu0 0.0
    %183 = vmatpush1.msra.mxu0 %v53
    %184 = vmatprep.subr.mxu0 0.0
    %185 = vmatpush1.msra.mxu0 %v54
    %186 = vmatprep.subr.mxu0 0.0
    %187 = vmatpush1.msra.mxu0 %v55
    %188 = vmatprep.subr.mxu0 0.0
    %189 = vmatpush1.msra.mxu0 %v56
    %190 = vmatprep.subr.mxu0 0.0
    %191 = vmatpush1.msra.mxu0 %v57
    %192 = vmatprep.subr.mxu0 0.0
    %193 = vmatpush1.msra.mxu0 0.0
    %194 = vmatprep.subr.mxu0 0.0
    %195 = vmatpush1.msra.mxu0 0.0
    %196 = vmatprep.subr.mxu0 0.0
    %197 = vmatpush1.msra.mxu0 0.0
    %198 = vmatprep.subr.mxu0 0.0
    %199 = vmatpush1.msra.mxu0 0.0
    %200 = vmatprep.subr.mxu0 0.0
    %201 = vmatpush1.msra.mxu0 0.0
    %202 = vmatprep.subr.mxu0 0.0
    %203 = vmatpush1.msra.mxu0 0.0
    %204 = vmatprep.subr.mxu0 0.0
    %205 = vmatpush1.msra.mxu0 0.0
    %206 = vmatprep.subr.mxu0 0.0
    %207 = vmatpush1.msra.mxu0 0.0
    %208 = vmatprep.subr.mxu0 0.0
    %209 = vmatpush1.msra.mxu0 0.0
    %210 = vmatprep.subr.mxu0 0.0
    %211 = vmatpush1.msra.mxu0 0.0
    %212 = vmatprep.subr.mxu0 0.0
    %213 = vmatpush1.msra.mxu0 0.0
    %214 = vmatprep.subr.mxu0 0.0
    %215 = vmatpush1.msra.mxu0 0.0
    %216 = vmatprep.subr.mxu0 0.0
    %217 = vmatpush1.msra.mxu0 0.0
    %218 = vmatprep.subr.mxu0 0.0
    %219 = vmatpush1.msra.mxu0 0.0
    %220 = vmatprep.subr.mxu0 0.0
    %221 = vmatpush1.msra.mxu0 0.0
    %222 = vmatprep.subr.mxu0 0.0
    %223 = vmatpush1.msra.mxu0 0.0
    %224 = vmatprep.mubr.f32.mxu0 0.0
    %225 = vmatmul.mubr.f32.gmra.mrb[0].mxu0 %v155
    %v226 = vpop.f32.mrb[0].mxu0
    %v227 = vadd.f32 %v159, %v226
    %v228 = vpop.f32.mrb[0].mxu0
    %229 = vdwg.mxu0
    %v230 = vmax.f32 %v227, 0.0
    %v231 = vlaneseq
    %v232 = vshrl.u32 %v231, 7
    %v233 = vsub.s32 0, %v232
    %v234 = vrot.slane %v76, %v233
    %235 = vmatprep.subr.mxu0 0.0
    %236 = vmatpush1.msra.mxu0 %v58
    %237 = vmatprep.subr.mxu0 0.0
    %238 = vmatpush1.msra.mxu0 %v59
    %239 = vmatprep.subr.mxu0 0.0
    %240 = vmatpush1.msra.mxu0 %v60
    %241 = vmatprep.subr.mxu0 0.0
    %242 = vmatpush1.msra.mxu0 %v61
    %243 = vmatprep.subr.mxu0 0.0
    %244 = vmatpush1.msra.mxu0 %v62
    %245 = vmatprep.subr.mxu0 0.0
    %246 = vmatpush1.msra.mxu0 %v63
    %247 = vmatprep.subr.mxu0 0.0
    %248 = vmatpush1.msra.mxu0 %v64
    %249 = vmatprep.subr.mxu0 0.0
    %250 = vmatpush1.msra.mxu0 %v65
    %251 = vmatprep.subr.mxu0 0.0
    %252 = vmatpush1.msra.mxu0 %v66
    %253 = vmatprep.subr.mxu0 0.0
    %254 = vmatpush1.msra.mxu0 %v67
    %255 = vmatprep.subr.mxu0 0.0
    %256 = vmatpush1.msra.mxu0 %v68
    %257 = vmatprep.subr.mxu0 0.0
    %258 = vmatpush1.msra.mxu0 %v69
    %259 = vmatprep.subr.mxu0 0.0
    %260 = vmatpush1.msra.mxu0 %v70
    %261 = vmatprep.subr.mxu0 0.0
    %262 = vmatpush1.msra.mxu0 %v71
    %263 = vmatprep.subr.mxu0 0.0
    %264 = vmatpush1.msra.mxu0 %v72
    %265 = vmatprep.subr.mxu0 0.0
    %266 = vmatpush1.msra.mxu0 %v73
    %267 = vmatprep.subr.mxu0 0.0
    %268 = vmatpush1.msra.mxu0 0.0
    %269 = vmatprep.subr.mxu0 0.0
    %270 = vmatpush1.msra.mxu0 0.0
    %271 = vmatprep.subr.mxu0 0.0
    %272 = vmatpush1.msra.mxu0 0.0
    %273 = vmatprep.subr.mxu0 0.0
    %274 = vmatpush1.msra.mxu0 0.0
    %275 = vmatprep.subr.mxu0 0.0
    %276 = vmatpush1.msra.mxu0 0.0
    %277 = vmatprep.subr.mxu0 0.0
    %278 = vmatpush1.msra.mxu0 0.0
    %279 = vmatprep.subr.mxu0 0.0
    %280 = vmatpush1.msra.mxu0 0.0
    %281 = vmatprep.subr.mxu0 0.0
    %282 = vmatpush1.msra.mxu0 0.0
    %283 = vmatprep.subr.mxu0 0.0
    %284 = vmatpush1.msra.mxu0 0.0
    %285 = vmatprep.subr.mxu0 0.0
    %286 = vmatpush1.msra.mxu0 0.0
    %287 = vmatprep.subr.mxu0 0.0
    %288 = vmatpush1.msra.mxu0 0.0
    %289 = vmatprep.subr.mxu0 0.0
    %290 = vmatpush1.msra.mxu0 0.0
    %291 = vmatprep.subr.mxu0 0.0
    %292 = vmatpush1.msra.mxu0 0.0
    %293 = vmatprep.subr.mxu0 0.0
    %294 = vmatpush1.msra.mxu0 0.0
    %295 = vmatprep.subr.mxu0 0.0
    %296 = vmatpush1.msra.mxu0 0.0
    %297 = vmatprep.subr.mxu0 0.0
    %298 = vmatpush1.msra.mxu0 0.0
    %299 = vmatprep.mubr.f32.mxu0 0.0
    %300 = vmatmul.mubr.f32.gmra.mrb[0].mxu0 %v230
    %v301 = vpop.f32.mrb[0].mxu0
    %v302 = vadd.f32 %v234, %v301
    %v303 = vpop.f32.mrb[0].mxu0
    %304 = vdwg.mxu0
    %v305 = vlaneseq
    %v306 = vand.u32 %v305, 127
    %vm307 = vcmp.lt.s32.totalorder %v306, 4
    %v308 = vsel %vm307, 1, 0
    %vm309 = vcmp.eq.s32.totalorder %v308, 1
    %v310 = vsel %vm309, %v302, -1e+30
    %v311 = vsel %vm81, %v310, -inf
    %312 = vmax.xlane.f32.xlu0 %v311
    %v313 = vpop.xlane.xlu0 %312
    %v314 = vsub.f32 %v310, %v313
    %v315 = vmul.f32 %v314, 1.442695
    %v316 = vpow.pop %v315
    %v317 = vsel %vm309, %v316, 0.0
    %v318 = vsel %vm81, %v317, 0.0
    %319 = vadd.xlane.f32.xlu0 %v318
    %v320 = vpop.xlane.xlu0 %319
    %v321 = vrcp.pop %v320
    %v322 = vmul.f32 %v317, %v321
    %v323 = vsel %vm309, %v322, %v302
    %324 = vst.msk [vmem:[%s3] sm:$0xff] %vm81, %v323
    // Predicated region
    $region22: #{actor_critic_forward.1} parent=1 // pred_check
      _
    $region23: #{actor_critic_forward.1} parent=1 // pred_check_branch
      %326 = sbr.rel (0) target = $region25
    $region24: #{actor_critic_forward.1} parent=1 // pred_region
      _
    $region25: #{actor_critic_forward.1} parent=1 // pred_fallthru
      _
    // Predicated region
    $region26: #{actor_critic_forward.1} parent=1 // pred_check
      _
    $region27: #{actor_critic_forward.1} parent=1 // pred_check_branch
      %328 = sbr.rel (0) target = $region29
    $region28: #{actor_critic_forward.1} parent=1 // pred_region
      _
    $region29: #{actor_critic_forward.1} parent=1 // pred_fallthru
      _
    %329 = vsyncpa [#allocation3], 1
    %330 = vsyncpa [#allocation5], 1

</llo_original>
